<compile_context>
chip_gen: v7x
topology: tpu7x:2x2x1
jax: 0.10.0
libtpu: 0.0.40
codegen_flags: <defaults>
</compile_context>

<pallas_src>
import functools

import jax
import jax.numpy as jnp
import numpy as np
from jax.experimental import pallas as pl
from jax.experimental.pallas import tpu as pltpu


def _sobel_kernel(col_ref, x_ref, o_ref, *, H, W, C):
    """col_ref: (1, HWp) int32 column index (flat_idx % W), x_ref: (TB, C, HWp),
    o_ref: (TB, HWp)."""
    TB = o_ref.shape[0]
    HWp = o_ref.shape[1]

    # Fused grayscale (matches torchvision transforms.Grayscale()); f32 math.
    if C == 3:
        gray = (0.2989 * x_ref[:, 0, :].astype(jnp.float32)
                + 0.587 * x_ref[:, 1, :].astype(jnp.float32)
                + 0.114 * x_ref[:, 2, :].astype(jnp.float32))
    else:
        gray = x_ref[:, 0, :].astype(jnp.float32)

    # Border masks implementing the conv's zero padding on the flattened axis.
    f = jax.lax.broadcasted_iota(jnp.int32, (TB, HWp), 1)   # flat pixel index
    j = col_ref[...]                                        # (1, HWp), = f % W
    left_ok = j > 0
    right_ok = j < (W - 1)
    up_ok = f >= W
    down_ok = f < (H - 1) * W

    lane_axis = gray.ndim - 1

    def nbr(shift, ok):
        # Shift so that nbr[f] == gray[f - shift]; wrapped-in values are always
        # masked off by `ok`, which reproduces zero padding exactly.
        s = shift % HWp
        rolled = gray if s == 0 else pltpu.roll(gray, shift=s, axis=lane_axis)
        return jnp.where(ok, rolled, 0.0)

    ul = nbr(W + 1, up_ok & left_ok)      # (i-1, j-1)
    u = nbr(W, up_ok)                     # (i-1, j  )
    ur = nbr(W - 1, up_ok & right_ok)     # (i-1, j+1)
    l = nbr(1, left_ok)                   # (i  , j-1)
    r = nbr(-1, right_ok)                 # (i  , j+1)
    dl = nbr(-(W - 1), down_ok & left_ok)   # (i+1, j-1)
    d = nbr(-W, down_ok)                    # (i+1, j  )
    dr = nbr(-(W + 1), down_ok & right_ok)  # (i+1, j+1)

    # sobel_x = [[-1,0,1],[-2,0,2],[-1,0,1]]; sobel_y = [[-1,-2,-1],[0,0,0],[1,2,1]]
    gx = (ur - ul) + 2.0 * (r - l) + (dr - dl)
    gy = (dl - ul) + 2.0 * (d - u) + (dr - ur)
    edges = jnp.sqrt(gx * gx + gy * gy + 1e-6)
    o_ref[...] = edges.astype(o_ref.dtype)


def edge_detection(x, *, target_step_bytes=1 << 20):
    """x: (B, C, H, W), C in {1, 3}. Returns (B, 1, H, W) Sobel edge magnitude."""
    B, C, H, W = x.shape
    if C not in (1, 3):
        raise ValueError(f"expected 1 or 3 channels, got {C}")
    HW = H * W
    # Lane-dense flattened spatial axis (pad only when H*W is not 128-aligned).
    HWp = ((HW + 127) // 128) * 128
    itemsize = jnp.dtype(x.dtype).itemsize

    xr = x.reshape(B, C, HW)
    if HWp != HW:
        xr = jnp.pad(xr, ((0, 0), (0, 0), (0, HWp - HW)))

    # Batch tile: big enough to amortize the per-grid-step overhead, small
    # enough that double-buffered blocks + stencil temporaries fit the default
    # scoped VMEM on every generation (v5e's 16 MiB is the tightest).
    bytes_per_img = (C + 1) * HWp * itemsize
    if B * bytes_per_img <= target_step_bytes or B <= 8:
        TB = B
    else:
        TB = max(8, (target_step_bytes // bytes_per_img) // 8 * 8)
    # TODO(synk): for very large single images (block >> VMEM) additionally
    # tile the flattened spatial axis with a W-element halo.
    Bp = -(-B // TB) * TB
    if Bp != B:
        xr = jnp.pad(xr, ((0, Bp - B), (0, 0), (0, 0)))

    # Precomputed column index (flat_idx % W): avoids vector integer modulo
    # inside the kernel; ~HWp*4 bytes, negligible traffic.
    col = jnp.asarray((np.arange(HWp) % W).astype(np.int32).reshape(1, HWp))

    kernel = functools.partial(_sobel_kernel, H=H, W=W, C=C)
    out = pl.pallas_call(
        kernel,
        out_shape=jax.ShapeDtypeStruct((Bp, HWp), x.dtype),
        grid_spec=pltpu.PrefetchScalarGridSpec(
            num_scalar_prefetch=0,
            grid=(Bp // TB,),
            in_specs=[
                pl.BlockSpec((1, HWp), lambda b: (0, 0)),         # col indices
                pl.BlockSpec((TB, C, HWp), lambda b: (b, 0, 0)),  # images
            ],
            out_specs=pl.BlockSpec((TB, HWp), lambda b: (b, 0)),
        ),
        compiler_params=pltpu.CompilerParams(
            dimension_semantics=("parallel",)),
        cost_estimate=pl.CostEstimate(
            flops=22 * Bp * HWp,
            transcendentals=Bp * HWp,
            bytes_accessed=(Bp * (C + 1) * HWp + HWp) * itemsize),
    )(col, xr)

    return out[:B, :HW].reshape(B, 1, H, W)


def _reference(x):
    # Pure-JAX reference (identical math to the PyTorch module).
    B, C, H, W = x.shape
    if C == 3:
        gray = 0.2989 * x[:, 0] + 0.587 * x[:, 1] + 0.114 * x[:, 2]
    else:
        gray = x[:, 0]
    xp = jnp.pad(gray, ((0, 0), (1, 1), (1, 1)))
    kx = jnp.array([[-1.0, 0.0, 1.0], [-2.0, 0.0, 2.0], [-1.0, 0.0, 1.0]])
    ky = jnp.array([[-1.0, -2.0, -1.0], [0.0, 0.0, 0.0], [1.0, 2.0, 1.0]])
    gx = jnp.zeros((B, H, W), jnp.float32)
    gy = jnp.zeros((B, H, W), jnp.float32)
    for i in range(3):
        for j in range(3):
            win = xp[:, i:i + H, j:j + W]
            gx = gx + kx[i, j] * win
            gy = gy + ky[i, j] * win
    return jnp.sqrt(gx * gx + gy * gy + 1e-6)[:, None]


if __name__ == "__main__":
    # RGB path (exercises the fused Grayscale() branch of the PyTorch model).
    x_rgb = jax.random.uniform(jax.random.PRNGKey(0), (2, 3, 16, 16),
                               dtype=jnp.float32)
    edges = edge_detection(x_rgb)
    jax.block_until_ready(edges)
    assert edges.shape == (2, 1, 16, 16)
    assert jnp.allclose(edges, _reference(x_rgb), atol=1e-5, rtol=1e-5)

    # Single-channel, non-square path.
    x_gray = jax.random.uniform(jax.random.PRNGKey(1), (2, 1, 16, 24),
                                dtype=jnp.float32)
    edges2 = edge_detection(x_gray)
    jax.block_until_ready(edges2)
    assert edges2.shape == (2, 1, 16, 24)
    assert jnp.allclose(edges2, _reference(x_gray), atol=1e-5, rtol=1e-5)

    print("KERNEL_OK")
</pallas_src>

<mosaic_0001>
module attributes {stable_mosaic.version = 11 : i64} {
  func.func @_sobel_kernel(%arg0: i32, %arg1: memref<1x256xi32, #tpu.memory_space<vmem>>, %arg2: memref<2x3x256xf32, #tpu.memory_space<vmem>>, %arg3: memref<2x256xf32, #tpu.memory_space<vmem>>) attributes {dimension_semantics = [#tpu.dimension_semantics<parallel>], iteration_bounds = array<i64: 1>, scalar_prefetch = 0 : i64, scratch_operands = 0 : i64, tpu.core_type = #tpu.core_type<tc>, window_params = [{pipeline_mode = #tpu.pipeline_mode<synchronous>, transform_indices = @transform_0, window_bounds = array<i64: 1, 256>}, {transform_indices = @transform_1, window_bounds = array<i64: 2, 3, 256>}, {transform_indices = @transform_2, window_bounds = array<i64: 2, 256>}]} {
    %c0 = arith.constant 0 : index
    %c0_0 = arith.constant 0 : index
    %c0_1 = arith.constant 0 : index
    %0 = vector.load %arg2[%c0, %c0_0, %c0_1] : memref<2x3x256xf32, #tpu.memory_space<vmem>>, vector<2x1x256xf32>
    %1 = vector.shape_cast %0 : vector<2x1x256xf32> to vector<2x256xf32>
    %cst = arith.constant 2.989000e-01 : f32
    %2 = vector.broadcast %cst : f32 to vector<2x256xf32>
    %3 = arith.mulf %2, %1 : vector<2x256xf32>
    %c0_2 = arith.constant 0 : index
    %c1 = arith.constant 1 : index
    %c0_3 = arith.constant 0 : index
    %4 = vector.load %arg2[%c0_2, %c1, %c0_3] : memref<2x3x256xf32, #tpu.memory_space<vmem>>, vector<2x1x256xf32>
    %5 = vector.shape_cast %4 : vector<2x1x256xf32> to vector<2x256xf32>
    %cst_4 = arith.constant 5.870000e-01 : f32
    %6 = vector.broadcast %cst_4 : f32 to vector<2x256xf32>
    %7 = arith.mulf %6, %5 : vector<2x256xf32>
    %8 = arith.addf %3, %7 : vector<2x256xf32>
    %c0_5 = arith.constant 0 : index
    %c2 = arith.constant 2 : index
    %c0_6 = arith.constant 0 : index
    %9 = vector.load %arg2[%c0_5, %c2, %c0_6] : memref<2x3x256xf32, #tpu.memory_space<vmem>>, vector<2x1x256xf32>
    %10 = vector.shape_cast %9 : vector<2x1x256xf32> to vector<2x256xf32>
    %cst_7 = arith.constant 1.140000e-01 : f32
    %11 = vector.broadcast %cst_7 : f32 to vector<2x256xf32>
    %12 = arith.mulf %11, %10 : vector<2x256xf32>
    %13 = arith.addf %8, %12 : vector<2x256xf32>
    %14 = tpu.iota {dimensions = array<i32: 1>} : vector<2x256xi32>
    %c0_8 = arith.constant 0 : index
    %c0_9 = arith.constant 0 : index
    %15 = vector.load %arg1[%c0_8, %c0_9] : memref<1x256xi32, #tpu.memory_space<vmem>>, vector<1x256xi32>
    %c0_i32 = arith.constant 0 : i32
    %16 = vector.broadcast %c0_i32 : i32 to vector<1x256xi32>
    %17 = arith.cmpi sgt, %15, %16 : vector<1x256xi32>
    %c15_i32 = arith.constant 15 : i32
    %18 = vector.broadcast %c15_i32 : i32 to vector<1x256xi32>
    %19 = arith.cmpi slt, %15, %18 : vector<1x256xi32>
    %c16_i32 = arith.constant 16 : i32
    %20 = vector.broadcast %c16_i32 : i32 to vector<2x256xi32>
    %21 = arith.cmpi sge, %14, %20 : vector<2x256xi32>
    %c240_i32 = arith.constant 240 : i32
    %22 = vector.broadcast %c240_i32 : i32 to vector<2x256xi32>
    %23 = arith.cmpi slt, %14, %22 : vector<2x256xi32>
    %24 = vector.broadcast %17 : vector<1x256xi1> to vector<2x256xi1>
    %25 = arith.andi %21, %24 : vector<2x256xi1>
    %c17_i32 = arith.constant 17 : i32
    %26 = tpu.dynamic_rotate %13 by %c17_i32 dim 1 : vector<2x256xf32>, i32 -> vector<2x256xf32>
    %cst_10 = arith.constant 0.000000e+00 : f32
    %27 = vector.broadcast %cst_10 : f32 to vector<2x256xf32>
    %28 = arith.select %25, %26, %27 : vector<2x256xi1>, vector<2x256xf32>
    %c16_i32_11 = arith.constant 16 : i32
    %29 = tpu.dynamic_rotate %13 by %c16_i32_11 dim 1 : vector<2x256xf32>, i32 -> vector<2x256xf32>
    %cst_12 = arith.constant 0.000000e+00 : f32
    %30 = vector.broadcast %cst_12 : f32 to vector<2x256xf32>
    %31 = arith.select %21, %29, %30 : vector<2x256xi1>, vector<2x256xf32>
    %32 = vector.broadcast %19 : vector<1x256xi1> to vector<2x256xi1>
    %33 = arith.andi %21, %32 : vector<2x256xi1>
    %c15_i32_13 = arith.constant 15 : i32
    %34 = tpu.dynamic_rotate %13 by %c15_i32_13 dim 1 : vector<2x256xf32>, i32 -> vector<2x256xf32>
    %cst_14 = arith.constant 0.000000e+00 : f32
    %35 = vector.broadcast %cst_14 : f32 to vector<2x256xf32>
    %36 = arith.select %33, %34, %35 : vector<2x256xi1>, vector<2x256xf32>
    %c1_i32 = arith.constant 1 : i32
    %37 = tpu.dynamic_rotate %13 by %c1_i32 dim 1 : vector<2x256xf32>, i32 -> vector<2x256xf32>
    %cst_15 = arith.constant 0.000000e+00 : f32
    %38 = vector.shape_cast %17 : vector<1x256xi1> to vector<1x256xi1>
    %39 = vector.broadcast %38 : vector<1x256xi1> to vector<2x256xi1>
    %40 = vector.broadcast %cst_15 : f32 to vector<2x256xf32>
    %41 = arith.select %39, %37, %40 : vector<2x256xi1>, vector<2x256xf32>
    %c255_i32 = arith.constant 255 : i32
    %42 = tpu.dynamic_rotate %13 by %c255_i32 dim 1 : vector<2x256xf32>, i32 -> vector<2x256xf32>
    %cst_16 = arith.constant 0.000000e+00 : f32
    %43 = vector.shape_cast %19 : vector<1x256xi1> to vector<1x256xi1>
    %44 = vector.broadcast %43 : vector<1x256xi1> to vector<2x256xi1>
    %45 = vector.broadcast %cst_16 : f32 to vector<2x256xf32>
    %46 = arith.select %44, %42, %45 : vector<2x256xi1>, vector<2x256xf32>
    %47 = vector.broadcast %17 : vector<1x256xi1> to vector<2x256xi1>
    %48 = arith.andi %23, %47 : vector<2x256xi1>
    %c241_i32 = arith.constant 241 : i32
    %49 = tpu.dynamic_rotate %13 by %c241_i32 dim 1 : vector<2x256xf32>, i32 -> vector<2x256xf32>
    %cst_17 = arith.constant 0.000000e+00 : f32
    %50 = vector.broadcast %cst_17 : f32 to vector<2x256xf32>
    %51 = arith.select %48, %49, %50 : vector<2x256xi1>, vector<2x256xf32>
    %c240_i32_18 = arith.constant 240 : i32
    %52 = tpu.dynamic_rotate %13 by %c240_i32_18 dim 1 : vector<2x256xf32>, i32 -> vector<2x256xf32>
    %cst_19 = arith.constant 0.000000e+00 : f32
    %53 = vector.broadcast %cst_19 : f32 to vector<2x256xf32>
    %54 = arith.select %23, %52, %53 : vector<2x256xi1>, vector<2x256xf32>
    %55 = vector.broadcast %19 : vector<1x256xi1> to vector<2x256xi1>
    %56 = arith.andi %23, %55 : vector<2x256xi1>
    %c239_i32 = arith.constant 239 : i32
    %57 = tpu.dynamic_rotate %13 by %c239_i32 dim 1 : vector<2x256xf32>, i32 -> vector<2x256xf32>
    %cst_20 = arith.constant 0.000000e+00 : f32
    %58 = vector.broadcast %cst_20 : f32 to vector<2x256xf32>
    %59 = arith.select %56, %57, %58 : vector<2x256xi1>, vector<2x256xf32>
    %60 = arith.subf %36, %28 : vector<2x256xf32>
    %61 = arith.subf %46, %41 : vector<2x256xf32>
    %cst_21 = arith.constant 2.000000e+00 : f32
    %62 = vector.broadcast %cst_21 : f32 to vector<2x256xf32>
    %63 = arith.mulf %62, %61 : vector<2x256xf32>
    %64 = arith.addf %60, %63 : vector<2x256xf32>
    %65 = arith.subf %59, %51 : vector<2x256xf32>
    %66 = arith.addf %64, %65 : vector<2x256xf32>
    %67 = arith.subf %51, %28 : vector<2x256xf32>
    %68 = arith.subf %54, %31 : vector<2x256xf32>
    %cst_22 = arith.constant 2.000000e+00 : f32
    %69 = vector.broadcast %cst_22 : f32 to vector<2x256xf32>
    %70 = arith.mulf %69, %68 : vector<2x256xf32>
    %71 = arith.addf %67, %70 : vector<2x256xf32>
    %72 = arith.subf %59, %36 : vector<2x256xf32>
    %73 = arith.addf %71, %72 : vector<2x256xf32>
    %74 = arith.mulf %66, %66 : vector<2x256xf32>
    %75 = arith.mulf %73, %73 : vector<2x256xf32>
    %76 = arith.addf %74, %75 : vector<2x256xf32>
    %cst_23 = arith.constant 9.99999997E-7 : f32
    %77 = vector.broadcast %cst_23 : f32 to vector<2x256xf32>
    %78 = arith.addf %76, %77 : vector<2x256xf32>
    %79 = math.sqrt %78 : vector<2x256xf32>
    %c0_24 = arith.constant 0 : index
    %c0_25 = arith.constant 0 : index
    %80 = vector.load %arg3[%c0_24, %c0_25] : memref<2x256xf32, #tpu.memory_space<vmem>>, vector<2x256xf32>
    tpu.vector_store %arg3[%c0_24, %c0_25], %79 {strides = array<i32>} : memref<2x256xf32, #tpu.memory_space<vmem>>, vector<2x256xf32>,
    return
  }
  func.func @transform_0(%arg0: i32) -> (i32, i32) {
    %c0_i32 = arith.constant 0 : i32
    %c0_i32_0 = arith.constant 0 : i32
    %c0_i32_1 = arith.constant 0 : i32
    return %c0_i32, %c0_i32_0 : i32, i32
  }
  func.func @transform_1(%arg0: i32) -> (i32, i32, i32) {
    %c0_i32 = arith.constant 0 : i32
    %c0_i32_0 = arith.constant 0 : i32
    %c0_i32_1 = arith.constant 0 : i32
    return %arg0, %c0_i32, %c0_i32_0 : i32, i32, i32
  }
  func.func @transform_2(%arg0: i32) -> (i32, i32) {
    %c0_i32 = arith.constant 0 : i32
    %c0_i32_0 = arith.constant 0 : i32
    return %arg0, %c0_i32 : i32, i32
  }
}

</mosaic_0001>

<llo_original>
// kernel: tpu_custom_call.1
$region0: #{tpu_custom_call.1}
  #allocation0 [shape = 'u32[]', space=smem, size = 0x4, offset = 0x4, fixed_abs, tag = 'smem constant byte address 0x4 - core index']
  #allocation1 [shape = 'u32[144,128]{1,0:T(1,128)}', space=vmem, size = 0x12000, scoped, tag = 'internal scratch']
  %s0 = inlined_call_operand.vmem [shape: s32[1,256], index: 0, kind: input, shape index: {}]
  %s1 = inlined_call_operand.vmem [shape: f32[2,3,256], index: 1, kind: input, shape index: {}]
  %s2 = inlined_call_operand.hbm [shape: f32[2,256], index: 2, kind: output, shape index: {}]
  %s3 = sld [smem:[#allocation0]]
  $region18: #{tpu_custom_call.1} parent=0
    _
  %s5 = ssub.s32 1, %s3
  %s6 = scalar_select 0, %s5, %s3
  $region1: #{tpu_custom_call.1} parent=0
    #allocation2 [shape = 'u8[2048]{0}', space=vmem, size = 0x800, scoped, tag = 'output window, operand 0, single buffered']
    #allocation3 [shape = 's32[1]{0}', space=sflag, size = 0x4, scoped, tag = 'scoped memory for tpu_custom_call.1']
    %7 = vsyncpa [#allocation3], 0
    // Predicated region
    $region2: #{tpu_custom_call.1} parent=1 // pred_check
      _
    $region3: #{tpu_custom_call.1} parent=1 // pred_check_branch
      %9 = sbr.rel (0) target = $region5
    $region4: #{tpu_custom_call.1} parent=1 // pred_region
      _
    $region5: #{tpu_custom_call.1} parent=1 // pred_fallthru
      _
    // Predicated region
    $region6: #{tpu_custom_call.1} parent=1 // pred_check
      _
    $region7: #{tpu_custom_call.1} parent=1 // pred_check_branch
      %11 = sbr.rel (0) target = $region9
    $region8: #{tpu_custom_call.1} parent=1 // pred_region
      _
    $region9: #{tpu_custom_call.1} parent=1 // pred_fallthru
      _
    %v12 = vld [vmem:[%s1] ss:$4 sm:$0x3]
    %s13 = scalar_lea.vmem %s1, 8
    %v14 = vld [vmem:[%s13] ss:$4 sm:$0x3]
    %v15 = vmul.f32 %v12, 0.2989
    %v16 = vmul.f32 %v14, 0.2989
    %s17 = scalar_lea.vmem %s1, 1
    %v18 = vld [vmem:[%s17] ss:$4 sm:$0x3]
    %s19 = scalar_lea.vmem %s1, 9
    %v20 = vld [vmem:[%s19] ss:$4 sm:$0x3]
    %v21 = vmul.f32 %v18, 0.587
    %v22 = vmul.f32 %v20, 0.587
    %v23 = vadd.f32 %v15, %v21
    %v24 = vadd.f32 %v16, %v22
    %s25 = scalar_lea.vmem %s1, 2
    %v26 = vld [vmem:[%s25] ss:$4 sm:$0x3]
    %s27 = scalar_lea.vmem %s1, 10
    %v28 = vld [vmem:[%s27] ss:$4 sm:$0x3]
    %v29 = vmul.f32 %v26, 0.114
    %v30 = vmul.f32 %v28, 0.114
    %v31 = vadd.f32 %v23, %v29
    %v32 = vadd.f32 %v24, %v30
    %v33 = vlaneseq
    %v34 = vand.u32 %v33, 127
    %v35 = vadd.s32 %v34, 128
    %v36 = vld [vmem:[%s0] sm:$0x3]
    %vm37 = vcmp.gt.s32.totalorder %v36, 0
    %vm38 = vcmp.lt.s32.totalorder %v36, 15
    %vm39 = vcmp.ge.s32.totalorder %v34, 16
    %vm40 = vcmp.ge.s32.totalorder %v35, 16
    %vm41 = vcmp.lt.s32.totalorder %v34, 240
    %vm42 = vcmp.lt.s32.totalorder %v35, 240
    %v43 = vsel %vm37, 1, 0
    %v44 = vlaneseq
    %v45 = vshrl.u32 %v44, 7
    %v46 = vsub.s32 0, %v45
    %v47 = vrot.slane %v43, %v46
    %v48 = vlaneseq
    %v49 = vshrl.u32 %v48, 7
    %v50 = vsub.s32 1, %v49
    %v51 = vrot.slane %v43, %v50
    %vm52 = vcmp.eq.s32.totalorder %v47, 1
    %vm53 = vcmp.eq.s32.totalorder %v51, 1
    %vm54 = vmand %vm39, %vm52
    %vm55 = vmand %vm40, %vm53
    %v58 = vcombine.low %v31, %v32
    %v60 = vunpack.c.l.s4 1966171168
    %v61 = vunpack.c.0.s8 %v60
    %v62 = vlaneseq
    %v63 = vshrl.u32 %v62, 7
    %v64 = vsub.s32 %v61, %v63
    %v65 = vrot.slane %v58, %v64
    %v66 = vcombine.high %v65, %v65
    %v68 = vunpack.c.l.s4 1966171168
    %v69 = vunpack.c.0.s8 %v68
    %v70 = vlaneseq
    %v71 = vshrl.u32 %v70, 7
    %v72 = vsub.s32 %v69, %v71
    %v73 = vrot.slane %v65, %v72
    %v75 = vunpack.c.l.s4 1966171168
    %v76 = vunpack.c.0.s8 %v75
    %v77 = vlaneseq
    %v78 = vshrl.u32 %v77, 7
    %v79 = vsub.s32 %v76, %v78
    %v80 = vrot.slane %v66, %v79
    %83 = vrot.lane.b32.xlu0 %v73, 17
    %v84 = vpop.permute.xlu0 %83
    %85 = vrot.lane.b32.xlu0 %v80, 17
    %v86 = vpop.permute.xlu0 %85
    %vm87 = vcmp.lt.s32.totalorder %v34, 17
    %v88 = vsel %vm87, %v84, %v86
    %v89 = vsel %vm87, %v86, %v84
    %v90 = vsel %vm54, %v89, 0.0
    %v91 = vsel %vm55, %v88, 0.0
    %92 = vrot.lane.b32.xlu0 %v73, 16
    %v93 = vpop.permute.xlu0 %92
    %94 = vrot.lane.b32.xlu0 %v80, 16
    %v95 = vpop.permute.xlu0 %94
    %vm96 = vcmp.lt.s32.totalorder %v34, 16
    %v97 = vsel %vm96, %v93, %v95
    %v98 = vsel %vm96, %v95, %v93
    %v99 = vsel %vm39, %v98, 0.0
    %v100 = vsel %vm40, %v97, 0.0
    %v101 = vsel %vm38, 1, 0
    %v102 = vlaneseq
    %v103 = vshrl.u32 %v102, 7
    %v104 = vsub.s32 0, %v103
    %v105 = vrot.slane %v101, %v104
    %v106 = vlaneseq
    %v107 = vshrl.u32 %v106, 7
    %v108 = vsub.s32 1, %v107
    %v109 = vrot.slane %v101, %v108
    %vm110 = vcmp.eq.s32.totalorder %v105, 1
    %vm111 = vcmp.eq.s32.totalorder %v109, 1
    %vm112 = vmand %vm39, %vm110
    %vm113 = vmand %vm40, %vm111
    %114 = vrot.lane.b32.xlu0 %v73, 15
    %v115 = vpop.permute.xlu0 %114
    %116 = vrot.lane.b32.xlu0 %v80, 15
    %v117 = vpop.permute.xlu0 %116
    %vm118 = vcmp.lt.s32.totalorder %v34, 15
    %v119 = vsel %vm118, %v115, %v117
    %v120 = vsel %vm118, %v117, %v115
    %v121 = vsel %vm112, %v120, 0.0
    %v122 = vsel %vm113, %v119, 0.0
    %123 = vrot.lane.b32.xlu0 %v73, 1
    %v124 = vpop.permute.xlu0 %123
    %125 = vrot.lane.b32.xlu0 %v80, 1
    %v126 = vpop.permute.xlu0 %125
    %vm127 = vcmp.lt.s32.totalorder %v34, 1
    %v128 = vsel %vm127, %v124, %v126
    %v129 = vsel %vm127, %v126, %v124
    %v130 = vsel %vm52, %v129, 0.0
    %v131 = vsel %vm53, %v128, 0.0
    %132 = vrot.lane.b32.xlu0 %v73, 127
    %v133 = vpop.permute.xlu0 %132
    %134 = vrot.lane.b32.xlu0 %v80, 127
    %v135 = vpop.permute.xlu0 %134
    %vm136 = vcmp.lt.s32.totalorder %v34, 127
    %v137 = vsel %vm136, %v133, %v135
    %v138 = vsel %vm136, %v135, %v133
    %v139 = vsel %vm110, %v137, 0.0
    %v140 = vsel %vm111, %v138, 0.0
    %vm141 = vmand %vm41, %vm52
    %vm142 = vmand %vm42, %vm53
    %143 = vrot.lane.b32.xlu0 %v73, 113
    %v144 = vpop.permute.xlu0 %143
    %145 = vrot.lane.b32.xlu0 %v80, 113
    %v146 = vpop.permute.xlu0 %145
    %vm147 = vcmp.lt.s32.totalorder %v34, 113
    %v148 = vsel %vm147, %v144, %v146
    %v149 = vsel %vm147, %v146, %v144
    %v150 = vsel %vm141, %v148, 0.0
    %v151 = vsel %vm142, %v149, 0.0
    %152 = vrot.lane.b32.xlu0 %v73, 112
    %v153 = vpop.permute.xlu0 %152
    %154 = vrot.lane.b32.xlu0 %v80, 112
    %v155 = vpop.permute.xlu0 %154
    %vm156 = vcmp.lt.s32.totalorder %v34, 112
    %v157 = vsel %vm156, %v153, %v155
    %v158 = vsel %vm156, %v155, %v153
    %v159 = vsel %vm41, %v157, 0.0
    %v160 = vsel %vm42, %v158, 0.0
    %vm161 = vmand %vm41, %vm110
    %vm162 = vmand %vm42, %vm111
    %163 = vrot.lane.b32.xlu0 %v73, 111
    %v164 = vpop.permute.xlu0 %163
    %165 = vrot.lane.b32.xlu0 %v80, 111
    %v166 = vpop.permute.xlu0 %165
    %vm167 = vcmp.lt.s32.totalorder %v34, 111
    %v168 = vsel %vm167, %v164, %v166
    %v169 = vsel %vm167, %v166, %v164
    %v170 = vsel %vm161, %v168, 0.0
    %v171 = vsel %vm162, %v169, 0.0
    %v172 = vsub.f32 %v121, %v90
    %v173 = vsub.f32 %v122, %v91
    %v174 = vsub.f32 %v139, %v130
    %v175 = vsub.f32 %v140, %v131
    %v176 = vmul.f32 %v174, 2.0
    %v177 = vmul.f32 %v175, 2.0
    %v178 = vadd.f32 %v172, %v176
    %v179 = vadd.f32 %v173, %v177
    %v180 = vsub.f32 %v170, %v150
    %v181 = vsub.f32 %v171, %v151
    %v182 = vadd.f32 %v178, %v180
    %v183 = vadd.f32 %v179, %v181
    %v184 = vsub.f32 %v150, %v90
    %v185 = vsub.f32 %v151, %v91
    %v186 = vsub.f32 %v159, %v99
    %v187 = vsub.f32 %v160, %v100
    %v188 = vmul.f32 %v186, 2.0
    %v189 = vmul.f32 %v187, 2.0
    %v190 = vadd.f32 %v184, %v188
    %v191 = vadd.f32 %v185, %v189
    %v192 = vsub.f32 %v170, %v121
    %v193 = vsub.f32 %v171, %v122
    %v194 = vadd.f32 %v190, %v192
    %v195 = vadd.f32 %v191, %v193
    %v196 = vmul.f32 %v182, %v182
    %v197 = vmul.f32 %v183, %v183
    %v198 = vmul.f32 %v194, %v194
    %v199 = vmul.f32 %v195, %v195
    %v200 = vadd.f32 %v196, %v198
    %v201 = vadd.f32 %v197, %v199
    %v202 = vadd.f32 %v200, 1e-06
    %v203 = vadd.f32 %v201, 1e-06
    %v204 = vrsqrt.pop %v202
    %v205 = vmul.f32 %v202, %v204
    %vm206 = vcmp.eq.f32.partialorder %v202, inf
    %v207 = vsel %vm206, %v202, %v205
    %vm208 = vcmp.eq.f32.partialorder %v202, 0.0
    %v209 = vand.u32 %v202, 2147483648
    %v210 = vsel %vm208, %v209, %v207
    %v211 = vrsqrt.pop %v203
    %v212 = vmul.f32 %v203, %v211
    %vm213 = vcmp.eq.f32.partialorder %v203, inf
    %v214 = vsel %vm213, %v203, %v212
    %vm215 = vcmp.eq.f32.partialorder %v203, 0.0
    %v216 = vand.u32 %v203, 2147483648
    %v217 = vsel %vm215, %v216, %v214
    %v220 = vcombine.low %v210, %v217
    %v222 = vunpack.c.l.s4 1983009808
    %v223 = vunpack.c.0.s8 %v222
    %v224 = vlaneseq
    %v225 = vshrl.u32 %v224, 7
    %v226 = vsub.s32 %v223, %v225
    %v227 = vrot.slane %v220, %v226
    %229 = vst [vmem:[#allocation2] sm:$0xf] %v227
    // Predicated region
    $region10: #{tpu_custom_call.1} parent=1 // pred_check
      _
    $region11: #{tpu_custom_call.1} parent=1 // pred_check_branch
      %231 = sbr.rel (0) target = $region13
    $region12: #{tpu_custom_call.1} parent=1 // pred_region
      %s233 = ssub.s32 64, 64
      %234 = vsyncadd [#allocation3], %s233
      %s236 = sshll.u32 [#allocation2], 4
      %s237 = int_to_ptr.vmem [resolvable:$true] %s236
      %239 = dma.vmem_to_hbm [thread:$0]  %s237, 64, %s2, [#allocation3]
    $region13: #{tpu_custom_call.1} parent=1 // pred_fallthru
      _
    // Predicated region
    $region14: #{tpu_custom_call.1} parent=1 // pred_check
      _
    $region15: #{tpu_custom_call.1} parent=1 // pred_check_branch
      %241 = sbr.rel (0) target = $region17
    $region16: #{tpu_custom_call.1} parent=1 // pred_region
      %242 = dma.done [#allocation3], 64
    $region17: #{tpu_custom_call.1} parent=1 // pred_fallthru
      _
    %243 = vsyncpa [#allocation3], 1

</llo_original>
